<compile_context>
chip_gen: v6e
topology: v6e:2x2x1
jax: 0.10.0
libtpu: 0.0.40
codegen_flags: <defaults>
</compile_context>

<pallas_src>
import functools

import jax
import jax.numpy as jnp
from jax.experimental import pallas as pl
from jax.experimental.pallas import tpu as pltpu


def _round_up(n, m):
    return (n + m - 1) // m * m


# ----------------------------- Pallas kernel --------------------------------
def nosenet_kernel(x_ref, alw_t_ref, mbw_t_ref, o_ref, *, hash_length):
    # AL projection:  x @ ALW.T   (== (ALW @ x.T).T in the PyTorch code)
    x = x_ref[...]                                                   # (bm, F)
    h = jax.nn.sigmoid(
        jnp.dot(x, alw_t_ref[...], preferred_element_type=jnp.float32))  # (bm, PN)

    # MB projection. Binary 0/1 weights stored in bf16 (exact); cast back to
    # f32 so the scores match an all-f32 reference bit-for-bit and the WTA
    # selection (including ties) is identical to jax.lax.top_k on f32 scores.
    w = mbw_t_ref[...].astype(jnp.float32)                           # (PN, OUT)
    y = jnp.dot(h, w, preferred_element_type=jnp.float32)            # (bm, OUT)

    # WTA: iteratively knock out the row-wise maximum `hash_length` times
    # (lowest index wins ties -> exact torch.topk / jax.lax.top_k semantics),
    # carrying only the working copy `yw`; reconstruct the dense output with a
    # single select afterwards.
    # TODO(synk): for OUT_FEATURES in the thousands, tile OUT on a second grid
    # axis with a per-tile local top-k followed by a small candidate merge.
    B, N = y.shape
    col = jax.lax.broadcasted_iota(jnp.int32, (B, N), 1)
    neg_inf = jnp.float32(-jnp.inf)

    def body(_, yw):
        row_max = jnp.max(yw, axis=1, keepdims=True)                 # (bm, 1)
        # first (lowest-index) argmax per row
        idx = jnp.min(jnp.where(yw == row_max, col, jnp.int32(N)),
                      axis=1, keepdims=True)                         # (bm, 1)
        return jnp.where(col == idx, neg_inf, yw)

    # hash_length is a small compile-time constant: unroll so the scheduler can
    # interleave the cross-lane reduces of consecutive iterations.
    yw = jax.lax.fori_loop(0, hash_length, body, y, unroll=True)

    o_ref[...] = jnp.where(yw == neg_inf, y, jnp.float32(0.0))


# ------------------------------- wrapper -------------------------------------
def nosenet_forward(x, alw_t, mbw_t, hash_length, *, batch_block=128):
    """x: (B, F) f32; alw_t: (F, PN) f32; mbw_t: (PN, OUT) bf16 (binary 0/1).

    Returns the dense equivalent of the PyTorch WTA sparse output: (B, OUT) f32.
    """
    B, F = x.shape
    PN, OUT = mbw_t.shape

    # batch tile: multiple of 8 sublanes (f32), capped at `batch_block` rows
    bm = min(batch_block, _round_up(B, 8))
    Bp = _round_up(B, bm)
    x = jnp.asarray(x, jnp.float32)
    if Bp != B:
        x = jnp.pad(x, ((0, Bp - B), (0, 0)))

    grid = (Bp // bm,)

    # Explicit scoped-VMEM budget: double-buffered streamed inputs + output
    # + in-kernel y/yw/col live values, with headroom but kept < 64 MiB so the
    # same tiling is safe on v7x (64 MiB/TC) as well as v5e/v6e.
    need = (2 * (bm * F * 4 + F * PN * 4 + PN * OUT * 2 + bm * OUT * 4)
            + 6 * bm * OUT * 4)
    vmem_limit = int(min(max(2 * need, 16 * 1024 * 1024), 48 * 1024 * 1024))

    kern = functools.partial(nosenet_kernel, hash_length=hash_length)
    out = pl.pallas_call(
        kern,
        out_shape=jax.ShapeDtypeStruct((Bp, OUT), jnp.float32),
        grid=grid,
        in_specs=[
            pl.BlockSpec((bm, F), lambda i: (i, 0)),      # x: streamed per batch tile
            pl.BlockSpec((F, PN), lambda i: (0, 0)),      # ALW^T: weight-stationary
            pl.BlockSpec((PN, OUT), lambda i: (0, 0)),    # MBW^T: weight-stationary
        ],
        out_specs=pl.BlockSpec((bm, OUT), lambda i: (i, 0)),  # lane-dense output tile
        compiler_params=pltpu.CompilerParams(
            dimension_semantics=("parallel",),            # megacore-shardable batch
            vmem_limit_bytes=vmem_limit),
    )(x, alw_t, mbw_t)
    return out[:B]


# --------------------------- parameter construction -------------------------
def make_params(key, nb_features, pns_reduction, dim_explosion, nb_proj_entries):
    """Deterministic synthetic versions of nosenetF.proj_matrix outputs.

    Transposes are hoisted here (weight-stationary inference): the forward path
    never pays an XLA transpose of the big (PN, OUT) weight.
    """
    nb_pns = int(nb_features * pns_reduction)
    out_features = nb_pns * dim_explosion
    k_al, k_mb = jax.random.split(key)
    # 'DG' -> dense Gaussian AL projection (PN x F)
    alw = jax.random.normal(k_al, (nb_pns, nb_features), jnp.float32)
    # sparse-binary MB projection: exactly nb_proj_entries ones per output row
    r = jax.random.uniform(k_mb, (out_features, nb_pns))
    ranks = jnp.argsort(jnp.argsort(-r, axis=1), axis=1)
    mbw = (ranks < nb_proj_entries).astype(jnp.float32)             # (OUT, PN)
    alw_t = jnp.asarray(alw.T, jnp.float32)                         # (F, PN)
    mbw_t = jnp.asarray(mbw.T, jnp.bfloat16)                        # (PN, OUT), 0/1 exact
    return alw_t, mbw_t, nb_pns, out_features


# --------------------------------- reference ---------------------------------
def nosenet_reference(x, alw_t, mbw_t, hash_length):
    h = jax.nn.sigmoid(x @ alw_t)
    y = h @ mbw_t.astype(jnp.float32)
    vals, idx = jax.lax.top_k(y, hash_length)
    out = jnp.zeros_like(y)
    rows = jnp.arange(y.shape[0])[:, None]
    return out.at[rows, idx].set(vals)


if __name__ == "__main__":
    # NoseNet params (small, consistent with the module's __init__)
    NB_FEATURES = 16
    PNS_REDUCTION_FACTOR = 0.5       # -> 8 PNs
    DIM_EXPLOSION_FACTOR = 16        # -> out_features = 128
    NB_PROJ_ENTRIES = 4
    MB_ACTIVITY_RATIO = 0.05         # -> hash_length = 6
    BATCH = 4

    key = jax.random.PRNGKey(0)
    k_x, k_p = jax.random.split(key)

    alw_t, mbw_t, nb_pns, out_features = make_params(
        k_p, NB_FEATURES, PNS_REDUCTION_FACTOR, DIM_EXPLOSION_FACTOR,
        NB_PROJ_ENTRIES)
    hash_length = int(MB_ACTIVITY_RATIO * out_features)

    x = jax.random.normal(k_x, (BATCH, NB_FEATURES), jnp.float32)

    out = nosenet_forward(x, alw_t, mbw_t, hash_length)
    out = jax.block_until_ready(out)

    ref = nosenet_reference(x, alw_t, mbw_t, hash_length)

    # exactly hash_length non-zeros per row, values match PyTorch WTA dense form
    nnz_ok = bool(jnp.all(jnp.sum(out != 0.0, axis=1) == hash_length))
    val_ok = bool(jnp.allclose(out, ref, atol=1e-5, rtol=1e-5))
    assert nnz_ok and val_ok, (nnz_ok, val_ok)
    print("KERNEL_OK")
</pallas_src>

<mosaic_0001>
module attributes {stable_mosaic.version = 11 : i64} {
  func.func @nosenet_kernel(%arg0: i32, %arg1: memref<8x16xf32, #tpu.memory_space<vmem>>, %arg2: memref<16x8xf32, #tpu.memory_space<vmem>>, %arg3: memref<8x128xbf16, #tpu.memory_space<vmem>>, %arg4: memref<8x128xf32, #tpu.memory_space<vmem>>) attributes {dimension_semantics = [#tpu.dimension_semantics<parallel>], iteration_bounds = array<i64: 1>, scalar_prefetch = 0 : i64, scratch_operands = 0 : i64, tpu.core_type = #tpu.core_type<tc>, window_params = [{transform_indices = @transform_0, window_bounds = array<i64: 8, 16>}, {pipeline_mode = #tpu.pipeline_mode<synchronous>, transform_indices = @transform_1, window_bounds = array<i64: 16, 8>}, {pipeline_mode = #tpu.pipeline_mode<synchronous>, transform_indices = @transform_2, window_bounds = array<i64: 8, 128>}, {transform_indices = @transform_3, window_bounds = array<i64: 8, 128>}]} {
    %c0 = arith.constant 0 : index
    %c0_0 = arith.constant 0 : index
    %0 = vector.load %arg1[%c0, %c0_0] : memref<8x16xf32, #tpu.memory_space<vmem>>, vector<8x16xf32>
    %c0_1 = arith.constant 0 : index
    %c0_2 = arith.constant 0 : index
    %1 = vector.load %arg2[%c0_1, %c0_2] : memref<16x8xf32, #tpu.memory_space<vmem>>, vector<16x8xf32>
    %cst = arith.constant dense<0.000000e+00> : vector<8x8xf32>
    %2 = tpu.matmul %0, %1, %cst {dimension_numbers = #tpu.dot_dimension_numbers<[1], [0], [0], [1], [0, 0, 1, 1], [], []>} : vector<8x16xf32>, vector<16x8xf32>, vector<8x8xf32> -> vector<8x8xf32>
    %3 = arith.negf %2 : vector<8x8xf32>
    %4 = math.exp %3 : vector<8x8xf32>
    %cst_3 = arith.constant 1.000000e+00 : f32
    %5 = vector.broadcast %cst_3 : f32 to vector<8x8xf32>
    %6 = arith.addf %5, %4 : vector<8x8xf32>
    %7 = arith.divf %5, %6 : vector<8x8xf32>
    %c0_4 = arith.constant 0 : index
    %c0_5 = arith.constant 0 : index
    %8 = vector.load %arg3[%c0_4, %c0_5] : memref<8x128xbf16, #tpu.memory_space<vmem>>, vector<8x128xbf16>
    %9 = arith.extf %8 : vector<8x128xbf16> to vector<8x128xf32>
    %cst_6 = arith.constant dense<0.000000e+00> : vector<8x128xf32>
    %10 = tpu.matmul %7, %9, %cst_6 {dimension_numbers = #tpu.dot_dimension_numbers<[1], [0], [0], [1], [0, 0, 1, 1], [], []>} : vector<8x8xf32>, vector<8x128xf32>, vector<8x128xf32> -> vector<8x128xf32>
    %11 = tpu.iota {dimensions = array<i32: 1>} : vector<8x128xi32>
    %cst_7 = arith.constant 0xFF800000 : f32
    %c0_i32 = arith.constant 0 : i32
    %cst_8 = arith.constant dense<0xFF800000> : vector<8xf32>
    %12 = vector.multi_reduction <maximumf>, %10, %cst_8 [1] : vector<8x128xf32> to vector<8xf32>
    %13 = vector.shape_cast %12 : vector<8xf32> to vector<8x1xf32>
    %14 = vector.broadcast %13 : vector<8x1xf32> to vector<8x128xf32>
    %15 = arith.cmpf oeq, %10, %14 : vector<8x128xf32>
    %c128_i32 = arith.constant 128 : i32
    %16 = vector.broadcast %c128_i32 : i32 to vector<8x128xi32>
    %17 = arith.select %15, %11, %16 : vector<8x128xi1>, vector<8x128xi32>
    %cst_9 = arith.constant dense<2147483647> : vector<8xi32>
    %18 = vector.multi_reduction <minsi>, %17, %cst_9 [1] : vector<8x128xi32> to vector<8xi32>
    %19 = vector.shape_cast %18 : vector<8xi32> to vector<8x1xi32>
    %20 = vector.broadcast %19 : vector<8x1xi32> to vector<8x128xi32>
    %21 = arith.cmpi eq, %11, %20 : vector<8x128xi32>
    %22 = vector.broadcast %cst_7 : f32 to vector<8x128xf32>
    %23 = arith.select %21, %22, %10 : vector<8x128xi1>, vector<8x128xf32>
    %c1_i32 = arith.constant 1 : i32
    %cst_10 = arith.constant dense<0xFF800000> : vector<8xf32>
    %24 = vector.multi_reduction <maximumf>, %23, %cst_10 [1] : vector<8x128xf32> to vector<8xf32>
    %25 = vector.shape_cast %24 : vector<8xf32> to vector<8x1xf32>
    %26 = vector.broadcast %25 : vector<8x1xf32> to vector<8x128xf32>
    %27 = arith.cmpf oeq, %23, %26 : vector<8x128xf32>
    %c128_i32_11 = arith.constant 128 : i32
    %28 = vector.broadcast %c128_i32_11 : i32 to vector<8x128xi32>
    %29 = arith.select %27, %11, %28 : vector<8x128xi1>, vector<8x128xi32>
    %cst_12 = arith.constant dense<2147483647> : vector<8xi32>
    %30 = vector.multi_reduction <minsi>, %29, %cst_12 [1] : vector<8x128xi32> to vector<8xi32>
    %31 = vector.shape_cast %30 : vector<8xi32> to vector<8x1xi32>
    %32 = vector.broadcast %31 : vector<8x1xi32> to vector<8x128xi32>
    %33 = arith.cmpi eq, %11, %32 : vector<8x128xi32>
    %34 = vector.broadcast %cst_7 : f32 to vector<8x128xf32>
    %35 = arith.select %33, %34, %23 : vector<8x128xi1>, vector<8x128xf32>
    %c2_i32 = arith.constant 2 : i32
    %cst_13 = arith.constant dense<0xFF800000> : vector<8xf32>
    %36 = vector.multi_reduction <maximumf>, %35, %cst_13 [1] : vector<8x128xf32> to vector<8xf32>
    %37 = vector.shape_cast %36 : vector<8xf32> to vector<8x1xf32>
    %38 = vector.broadcast %37 : vector<8x1xf32> to vector<8x128xf32>
    %39 = arith.cmpf oeq, %35, %38 : vector<8x128xf32>
    %c128_i32_14 = arith.constant 128 : i32
    %40 = vector.broadcast %c128_i32_14 : i32 to vector<8x128xi32>
    %41 = arith.select %39, %11, %40 : vector<8x128xi1>, vector<8x128xi32>
    %cst_15 = arith.constant dense<2147483647> : vector<8xi32>
    %42 = vector.multi_reduction <minsi>, %41, %cst_15 [1] : vector<8x128xi32> to vector<8xi32>
    %43 = vector.shape_cast %42 : vector<8xi32> to vector<8x1xi32>
    %44 = vector.broadcast %43 : vector<8x1xi32> to vector<8x128xi32>
    %45 = arith.cmpi eq, %11, %44 : vector<8x128xi32>
    %46 = vector.broadcast %cst_7 : f32 to vector<8x128xf32>
    %47 = arith.select %45, %46, %35 : vector<8x128xi1>, vector<8x128xf32>
    %c3_i32 = arith.constant 3 : i32
    %cst_16 = arith.constant dense<0xFF800000> : vector<8xf32>
    %48 = vector.multi_reduction <maximumf>, %47, %cst_16 [1] : vector<8x128xf32> to vector<8xf32>
    %49 = vector.shape_cast %48 : vector<8xf32> to vector<8x1xf32>
    %50 = vector.broadcast %49 : vector<8x1xf32> to vector<8x128xf32>
    %51 = arith.cmpf oeq, %47, %50 : vector<8x128xf32>
    %c128_i32_17 = arith.constant 128 : i32
    %52 = vector.broadcast %c128_i32_17 : i32 to vector<8x128xi32>
    %53 = arith.select %51, %11, %52 : vector<8x128xi1>, vector<8x128xi32>
    %cst_18 = arith.constant dense<2147483647> : vector<8xi32>
    %54 = vector.multi_reduction <minsi>, %53, %cst_18 [1] : vector<8x128xi32> to vector<8xi32>
    %55 = vector.shape_cast %54 : vector<8xi32> to vector<8x1xi32>
    %56 = vector.broadcast %55 : vector<8x1xi32> to vector<8x128xi32>
    %57 = arith.cmpi eq, %11, %56 : vector<8x128xi32>
    %58 = vector.broadcast %cst_7 : f32 to vector<8x128xf32>
    %59 = arith.select %57, %58, %47 : vector<8x128xi1>, vector<8x128xf32>
    %c4_i32 = arith.constant 4 : i32
    %cst_19 = arith.constant dense<0xFF800000> : vector<8xf32>
    %60 = vector.multi_reduction <maximumf>, %59, %cst_19 [1] : vector<8x128xf32> to vector<8xf32>
    %61 = vector.shape_cast %60 : vector<8xf32> to vector<8x1xf32>
    %62 = vector.broadcast %61 : vector<8x1xf32> to vector<8x128xf32>
    %63 = arith.cmpf oeq, %59, %62 : vector<8x128xf32>
    %c128_i32_20 = arith.constant 128 : i32
    %64 = vector.broadcast %c128_i32_20 : i32 to vector<8x128xi32>
    %65 = arith.select %63, %11, %64 : vector<8x128xi1>, vector<8x128xi32>
    %cst_21 = arith.constant dense<2147483647> : vector<8xi32>
    %66 = vector.multi_reduction <minsi>, %65, %cst_21 [1] : vector<8x128xi32> to vector<8xi32>
    %67 = vector.shape_cast %66 : vector<8xi32> to vector<8x1xi32>
    %68 = vector.broadcast %67 : vector<8x1xi32> to vector<8x128xi32>
    %69 = arith.cmpi eq, %11, %68 : vector<8x128xi32>
    %70 = vector.broadcast %cst_7 : f32 to vector<8x128xf32>
    %71 = arith.select %69, %70, %59 : vector<8x128xi1>, vector<8x128xf32>
    %c5_i32 = arith.constant 5 : i32
    %cst_22 = arith.constant dense<0xFF800000> : vector<8xf32>
    %72 = vector.multi_reduction <maximumf>, %71, %cst_22 [1] : vector<8x128xf32> to vector<8xf32>
    %73 = vector.shape_cast %72 : vector<8xf32> to vector<8x1xf32>
    %74 = vector.broadcast %73 : vector<8x1xf32> to vector<8x128xf32>
    %75 = arith.cmpf oeq, %71, %74 : vector<8x128xf32>
    %c128_i32_23 = arith.constant 128 : i32
    %76 = vector.broadcast %c128_i32_23 : i32 to vector<8x128xi32>
    %77 = arith.select %75, %11, %76 : vector<8x128xi1>, vector<8x128xi32>
    %cst_24 = arith.constant dense<2147483647> : vector<8xi32>
    %78 = vector.multi_reduction <minsi>, %77, %cst_24 [1] : vector<8x128xi32> to vector<8xi32>
    %79 = vector.shape_cast %78 : vector<8xi32> to vector<8x1xi32>
    %80 = vector.broadcast %79 : vector<8x1xi32> to vector<8x128xi32>
    %81 = arith.cmpi eq, %11, %80 : vector<8x128xi32>
    %82 = vector.broadcast %cst_7 : f32 to vector<8x128xf32>
    %83 = arith.select %81, %82, %71 : vector<8x128xi1>, vector<8x128xf32>
    %cst_25 = arith.constant 0xFF800000 : f32
    %84 = vector.broadcast %cst_25 : f32 to vector<8x128xf32>
    %85 = arith.cmpf oeq, %83, %84 : vector<8x128xf32>
    %cst_26 = arith.constant 0.000000e+00 : f32
    %86 = vector.broadcast %cst_26 : f32 to vector<8x128xf32>
    %87 = arith.select %85, %10, %86 : vector<8x128xi1>, vector<8x128xf32>
    %c0_27 = arith.constant 0 : index
    %c0_28 = arith.constant 0 : index
    %88 = vector.load %arg4[%c0_27, %c0_28] : memref<8x128xf32, #tpu.memory_space<vmem>>, vector<8x128xf32>
    tpu.vector_store %arg4[%c0_27, %c0_28], %87 {strides = array<i32>} : memref<8x128xf32, #tpu.memory_space<vmem>>, vector<8x128xf32>,
    return
  }
  func.func @transform_0(%arg0: i32) -> (i32, i32) {
    %c0_i32 = arith.constant 0 : i32
    %c0_i32_0 = arith.constant 0 : i32
    return %arg0, %c0_i32 : i32, i32
  }
  func.func @transform_1(%arg0: i32) -> (i32, i32) {
    %c0_i32 = arith.constant 0 : i32
    %c0_i32_0 = arith.constant 0 : i32
    %c0_i32_1 = arith.constant 0 : i32
    return %c0_i32, %c0_i32_0 : i32, i32
  }
  func.func @transform_2(%arg0: i32) -> (i32, i32) {
    %c0_i32 = arith.constant 0 : i32
    %c0_i32_0 = arith.constant 0 : i32
    %c0_i32_1 = arith.constant 0 : i32
    return %c0_i32, %c0_i32_0 : i32, i32
  }
  func.func @transform_3(%arg0: i32) -> (i32, i32) {
    %c0_i32 = arith.constant 0 : i32
    %c0_i32_0 = arith.constant 0 : i32
    return %arg0, %c0_i32 : i32, i32
  }
}

</mosaic_0001>

<llo_original>
// kernel: tpu_custom_call.1
$region0: #{tpu_custom_call.1}
  #allocation0 [shape = 'u32[]', space=smem, size = 0x4, offset = 0x4, fixed_abs, tag = 'smem constant byte address 0x4 - core index']
  #allocation1 [shape = 'u32[144,128]{1,0:T(1,128)}', space=vmem, size = 0x12000, scoped, tag = 'internal scratch']
  %s0 = inlined_call_operand.vmem [shape: f32[8,16], index: 0, kind: input, shape index: {}]
  %s1 = inlined_call_operand.vmem [shape: f32[16,8], index: 1, kind: input, shape index: {}]
  %s2 = inlined_call_operand.vmem [shape: bf16[8,128], index: 2, kind: input, shape index: {}]
  %s3 = inlined_call_operand.hbm [shape: f32[8,128], index: 3, kind: output, shape index: {}]
  %s4 = sld [smem:[#allocation0]]
  $region22: #{tpu_custom_call.1} parent=0
    _
  %s6 = ssub.s32 1, %s4
  %s7 = scalar_select 0, %s6, %s4
  $region1: #{tpu_custom_call.1} parent=0
    #allocation2 [shape = 'u8[4096]{0}', space=vmem, size = 0x1000, scoped, tag = 'output window, operand 0, single buffered']
    #allocation3 [shape = 's32[1]{0}', space=sflag, size = 0x4, scoped, tag = 'scoped memory for tpu_custom_call.1']
    %8 = vsyncpa [#allocation3], 0
    // Predicated region
    $region2: #{tpu_custom_call.1} parent=1 // pred_check
      _
    $region3: #{tpu_custom_call.1} parent=1 // pred_check_branch
      %10 = sbr.rel (0) target = $region5
    $region4: #{tpu_custom_call.1} parent=1 // pred_region
      _
    $region5: #{tpu_custom_call.1} parent=1 // pred_fallthru
      _
    // Predicated region
    $region6: #{tpu_custom_call.1} parent=1 // pred_check
      _
    $region7: #{tpu_custom_call.1} parent=1 // pred_check_branch
      %12 = sbr.rel (0) target = $region9
    $region8: #{tpu_custom_call.1} parent=1 // pred_region
      _
    $region9: #{tpu_custom_call.1} parent=1 // pred_fallthru
      _
    // Predicated region
    $region10: #{tpu_custom_call.1} parent=1 // pred_check
      _
    $region11: #{tpu_custom_call.1} parent=1 // pred_check_branch
      %14 = sbr.rel (0) target = $region13
    $region12: #{tpu_custom_call.1} parent=1 // pred_region
      _
    $region13: #{tpu_custom_call.1} parent=1 // pred_fallthru
      _
    %v15 = vld [vmem:[%s0] sm:$0xff]
    %v16 = vld [vmem:[%s1] sm:$0xff]
    %v17 = vld [vmem:[%s1 + $0x8] sm:$0xff]
    %vm18 = vcmask 130048
    %v20 = vsel %vm18, %v15, 0
    %22 = vmatprep.subr.mxu0 0.0
    %23 = vmatpush1.msra.mxu0 0.0
    %24 = vmatprep.subr.mxu0 0.0
    %25 = vmatpush1.msra.mxu0 0.0
    %26 = vmatprep.subr.mxu0 0.0
    %27 = vmatpush1.msra.mxu0 0.0
    %28 = vmatprep.subr.mxu0 0.0
    %29 = vmatpush1.msra.mxu0 0.0
    %30 = vmatprep.subr.mxu0 0.0
    %31 = vmatpush1.msra.mxu0 0.0
    %32 = vmatprep.subr.mxu0 0.0
    %33 = vmatpush1.msra.mxu0 0.0
    %34 = vmatprep.subr.mxu0 0.0
    %35 = vmatpush1.msra.mxu0 0.0
    %36 = vmatprep.subr.mxu0 0.0
    %37 = vmatpush1.msra.mxu0 0.0
    %38 = vmatprep.subr.mxu0 0.0
    %39 = vmatpush1.msra.mxu0 0.0
    %40 = vmatprep.subr.mxu0 0.0
    %41 = vmatpush1.msra.mxu0 0.0
    %42 = vmatprep.subr.mxu0 0.0
    %43 = vmatpush1.msra.mxu0 0.0
    %44 = vmatprep.subr.mxu0 0.0
    %45 = vmatpush1.msra.mxu0 0.0
    %46 = vmatprep.subr.mxu0 0.0
    %47 = vmatpush1.msra.mxu0 0.0
    %48 = vmatprep.subr.mxu0 0.0
    %49 = vmatpush1.msra.mxu0 0.0
    %50 = vmatprep.subr.mxu0 0.0
    %51 = vmatpush1.msra.mxu0 %v17
    %52 = vmatprep.subr.mxu0 0.0
    %53 = vmatpush1.msra.mxu0 %v16
    %54 = vmatprep.subr.mxu0 0.0
    %55 = vmatpush2.msra.mxu0 0.0
    %56 = vmatprep.subr.mxu0 0.0
    %57 = vmatpush2.msra.mxu0 0.0
    %58 = vmatprep.subr.mxu0 0.0
    %59 = vmatpush2.msra.mxu0 0.0
    %60 = vmatprep.subr.mxu0 0.0
    %61 = vmatpush2.msra.mxu0 0.0
    %62 = vmatprep.subr.mxu0 0.0
    %63 = vmatpush2.msra.mxu0 0.0
    %64 = vmatprep.subr.mxu0 0.0
    %65 = vmatpush2.msra.mxu0 0.0
    %66 = vmatprep.subr.mxu0 0.0
    %67 = vmatpush2.msra.mxu0 0.0
    %68 = vmatprep.subr.mxu0 0.0
    %69 = vmatpush2.msra.mxu0 0.0
    %70 = vmatprep.subr.mxu0 0.0
    %71 = vmatpush2.msra.mxu0 0.0
    %72 = vmatprep.subr.mxu0 0.0
    %73 = vmatpush2.msra.mxu0 0.0
    %74 = vmatprep.subr.mxu0 0.0
    %75 = vmatpush2.msra.mxu0 0.0
    %76 = vmatprep.subr.mxu0 0.0
    %77 = vmatpush2.msra.mxu0 0.0
    %78 = vmatprep.subr.mxu0 0.0
    %79 = vmatpush2.msra.mxu0 0.0
    %80 = vmatprep.subr.mxu0 0.0
    %81 = vmatpush2.msra.mxu0 0.0
    %82 = vmatprep.subr.mxu0 0.0
    %83 = vmatpush2.msra.mxu0 0.0
    %84 = vmatprep.subr.mxu0 0.0
    %85 = vmatpush2.msra.mxu0 0.0
    %86 = vmatprep.mubr.f32.mxu0 0.0
    %87 = vmatmul.mubr.f32.gmra.mxu0 %v20
    %v88 = vpop.f32.mrf.mxu0
    %v89 = vadd.f32 0.0, %v88
    %v90 = vpop.f32.mrf.mxu0
    %91 = vdwg.mxu0
    %v92 = vxor.u32 %v89, 2147483648
    %v93 = vmul.f32 %v92, 1.442695
    %v94 = vpow.pop %v93
    %v95 = vadd.f32 %v94, 1.0
    %v96 = vrcp.pop %v95
    %v97 = vmul.f32 1.0, %v96
    %v98 = vld [vmem:[%s2] sm:$0xf]
    %v99 = vunpack.c.l.bf16 %v98
    %vm100 = vcmask 64512
    %v102 = vsel %vm100, %v97, 0
    %104 = vmatprep.subr.mxu0 0.0
    %105 = vmatpush1.msra.mxu0 0.0
    %106 = vmatprep.subr.mxu0 0.0
    %107 = vmatpush1.msra.mxu0 0.0
    %108 = vmatprep.subr.mxu0 0.0
    %109 = vmatpush1.msra.mxu0 0.0
    %110 = vmatprep.subr.mxu0 0.0
    %111 = vmatpush1.msra.mxu0 0.0
    %112 = vmatprep.subr.mxu0 0.0
    %113 = vmatpush1.msra.mxu0 0.0
    %114 = vmatprep.subr.mxu0 0.0
    %115 = vmatpush1.msra.mxu0 0.0
    %116 = vmatprep.subr.mxu0 0.0
    %117 = vmatpush1.msra.mxu0 0.0
    %118 = vmatprep.subr.mxu0 0.0
    %119 = vmatpush1.msra.mxu0 0.0
    %120 = vmatprep.subr.mxu0 0.0
    %121 = vmatpush1.msra.mxu0 0.0
    %122 = vmatprep.subr.mxu0 0.0
    %123 = vmatpush1.msra.mxu0 0.0
    %124 = vmatprep.subr.mxu0 0.0
    %125 = vmatpush1.msra.mxu0 0.0
    %126 = vmatprep.subr.mxu0 0.0
    %127 = vmatpush1.msra.mxu0 0.0
    %128 = vmatprep.subr.mxu0 0.0
    %129 = vmatpush1.msra.mxu0 0.0
    %130 = vmatprep.subr.mxu0 0.0
    %131 = vmatpush1.msra.mxu0 0.0
    %132 = vmatprep.subr.mxu0 0.0
    %133 = vmatpush1.msra.mxu0 0.0
    %134 = vmatprep.subr.mxu0 0.0
    %135 = vmatpush1.msra.mxu0 %v99
    %136 = vmatprep.subr.mxu0 0.0
    %137 = vmatpush2.msra.mxu0 0.0
    %138 = vmatprep.subr.mxu0 0.0
    %139 = vmatpush2.msra.mxu0 0.0
    %140 = vmatprep.subr.mxu0 0.0
    %141 = vmatpush2.msra.mxu0 0.0
    %142 = vmatprep.subr.mxu0 0.0
    %143 = vmatpush2.msra.mxu0 0.0
    %144 = vmatprep.subr.mxu0 0.0
    %145 = vmatpush2.msra.mxu0 0.0
    %146 = vmatprep.subr.mxu0 0.0
    %147 = vmatpush2.msra.mxu0 0.0
    %148 = vmatprep.subr.mxu0 0.0
    %149 = vmatpush2.msra.mxu0 0.0
    %150 = vmatprep.subr.mxu0 0.0
    %151 = vmatpush2.msra.mxu0 0.0
    %152 = vmatprep.subr.mxu0 0.0
    %153 = vmatpush2.msra.mxu0 0.0
    %154 = vmatprep.subr.mxu0 0.0
    %155 = vmatpush2.msra.mxu0 0.0
    %156 = vmatprep.subr.mxu0 0.0
    %157 = vmatpush2.msra.mxu0 0.0
    %158 = vmatprep.subr.mxu0 0.0
    %159 = vmatpush2.msra.mxu0 0.0
    %160 = vmatprep.subr.mxu0 0.0
    %161 = vmatpush2.msra.mxu0 0.0
    %162 = vmatprep.subr.mxu0 0.0
    %163 = vmatpush2.msra.mxu0 0.0
    %164 = vmatprep.subr.mxu0 0.0
    %165 = vmatpush2.msra.mxu0 0.0
    %166 = vmatprep.subr.mxu0 0.0
    %167 = vmatpush2.msra.mxu0 0.0
    %168 = vmatprep.mubr.f32.mxu0 0.0
    %169 = vmatmul.mubr.f32.gmra.mxu0 %v102
    %v170 = vpop.f32.mrf.mxu0
    %v171 = vadd.f32 0.0, %v170
    %v172 = vpop.f32.mrf.mxu0
    %173 = vdwg.mxu0
    %v174 = vlaneseq
    %v175 = vand.u32 %v174, 127
    %176 = vmax.xlane.f32.xlu0 %v171
    %v177 = vpop.xlane.xlu0 %176
    %vm178 = vcmp.eq.f32.partialorder %v171, %v177
    %v179 = vsel %vm178, %v175, 128
    %v180 = vand.u32 %v179, 65535
    %v181 = vshra.s32 %v179, 16
    %v182 = vcvt.s32.f32 %v180
    %v183 = vcvt.s32.f32 %v181
    %184 = vmin.xlane.f32.xlu0 %v183
    %v185 = vpop.xlane.xlu0 %184
    %vm186 = vcmp.eq.f32.partialorder %v183, %v185
    %v187 = vsel %vm186, %v182, inf
    %188 = vmin.xlane.f32.xlu0 %v187
    %v189 = vpop.xlane.xlu0 %188
    %v190 = vcvt.f32.s32 %v189
    %v191 = vcvt.f32.s32 %v185
    %v192 = vshll.u32 %v191, 16
    %v193 = vadd.s32 %v192, %v190
    %vm194 = vcmp.eq.s32.totalorder %v175, %v193
    %v195 = vsel %vm194, -inf, %v171
    %196 = vmax.xlane.f32.xlu0 %v195
    %v197 = vpop.xlane.xlu0 %196
    %vm198 = vcmp.eq.f32.partialorder %v195, %v197
    %v199 = vsel %vm198, %v175, 128
    %v200 = vand.u32 %v199, 65535
    %v201 = vshra.s32 %v199, 16
    %v202 = vcvt.s32.f32 %v200
    %v203 = vcvt.s32.f32 %v201
    %204 = vmin.xlane.f32.xlu0 %v203
    %v205 = vpop.xlane.xlu0 %204
    %vm206 = vcmp.eq.f32.partialorder %v203, %v205
    %v207 = vsel %vm206, %v202, inf
    %208 = vmin.xlane.f32.xlu0 %v207
    %v209 = vpop.xlane.xlu0 %208
    %v210 = vcvt.f32.s32 %v209
    %v211 = vcvt.f32.s32 %v205
    %v212 = vshll.u32 %v211, 16
    %v213 = vadd.s32 %v212, %v210
    %vm214 = vcmp.eq.s32.totalorder %v175, %v213
    %v215 = vsel %vm214, -inf, %v195
    %216 = vmax.xlane.f32.xlu0 %v215
    %v217 = vpop.xlane.xlu0 %216
    %vm218 = vcmp.eq.f32.partialorder %v215, %v217
    %v219 = vsel %vm218, %v175, 128
    %v220 = vand.u32 %v219, 65535
    %v221 = vshra.s32 %v219, 16
    %v222 = vcvt.s32.f32 %v220
    %v223 = vcvt.s32.f32 %v221
    %224 = vmin.xlane.f32.xlu0 %v223
    %v225 = vpop.xlane.xlu0 %224
    %vm226 = vcmp.eq.f32.partialorder %v223, %v225
    %v227 = vsel %vm226, %v222, inf
    %228 = vmin.xlane.f32.xlu0 %v227
    %v229 = vpop.xlane.xlu0 %228
    %v230 = vcvt.f32.s32 %v229
    %v231 = vcvt.f32.s32 %v225
    %v232 = vshll.u32 %v231, 16
    %v233 = vadd.s32 %v232, %v230
    %vm234 = vcmp.eq.s32.totalorder %v175, %v233
    %v235 = vsel %vm234, -inf, %v215
    %236 = vmax.xlane.f32.xlu0 %v235
    %v237 = vpop.xlane.xlu0 %236
    %vm238 = vcmp.eq.f32.partialorder %v235, %v237
    %v239 = vsel %vm238, %v175, 128
    %v240 = vand.u32 %v239, 65535
    %v241 = vshra.s32 %v239, 16
    %v242 = vcvt.s32.f32 %v240
    %v243 = vcvt.s32.f32 %v241
    %244 = vmin.xlane.f32.xlu0 %v243
    %v245 = vpop.xlane.xlu0 %244
    %vm246 = vcmp.eq.f32.partialorder %v243, %v245
    %v247 = vsel %vm246, %v242, inf
    %248 = vmin.xlane.f32.xlu0 %v247
    %v249 = vpop.xlane.xlu0 %248
    %v250 = vcvt.f32.s32 %v249
    %v251 = vcvt.f32.s32 %v245
    %v252 = vshll.u32 %v251, 16
    %v253 = vadd.s32 %v252, %v250
    %vm254 = vcmp.eq.s32.totalorder %v175, %v253
    %v255 = vsel %vm254, -inf, %v235
    %256 = vmax.xlane.f32.xlu0 %v255
    %v257 = vpop.xlane.xlu0 %256
    %vm258 = vcmp.eq.f32.partialorder %v255, %v257
    %v259 = vsel %vm258, %v175, 128
    %v260 = vand.u32 %v259, 65535
    %v261 = vshra.s32 %v259, 16
    %v262 = vcvt.s32.f32 %v260
    %v263 = vcvt.s32.f32 %v261
    %264 = vmin.xlane.f32.xlu0 %v263
    %v265 = vpop.xlane.xlu0 %264
    %vm266 = vcmp.eq.f32.partialorder %v263, %v265
    %v267 = vsel %vm266, %v262, inf
    %268 = vmin.xlane.f32.xlu0 %v267
    %v269 = vpop.xlane.xlu0 %268
    %v270 = vcvt.f32.s32 %v269
    %v271 = vcvt.f32.s32 %v265
    %v272 = vshll.u32 %v271, 16
    %v273 = vadd.s32 %v272, %v270
    %vm274 = vcmp.eq.s32.totalorder %v175, %v273
    %v275 = vsel %vm274, -inf, %v255
    %276 = vmax.xlane.f32.xlu0 %v275
    %v277 = vpop.xlane.xlu0 %276
    %vm278 = vcmp.eq.f32.partialorder %v275, %v277
    %v279 = vsel %vm278, %v175, 128
    %v280 = vand.u32 %v279, 65535
    %v281 = vshra.s32 %v279, 16
    %v282 = vcvt.s32.f32 %v280
    %v283 = vcvt.s32.f32 %v281
    %284 = vmin.xlane.f32.xlu0 %v283
    %v285 = vpop.xlane.xlu0 %284
    %vm286 = vcmp.eq.f32.partialorder %v283, %v285
    %v287 = vsel %vm286, %v282, inf
    %288 = vmin.xlane.f32.xlu0 %v287
    %v289 = vpop.xlane.xlu0 %288
    %v290 = vcvt.f32.s32 %v289
    %v291 = vcvt.f32.s32 %v285
    %v292 = vshll.u32 %v291, 16
    %v293 = vadd.s32 %v292, %v290
    %vm294 = vcmp.eq.s32.totalorder %v175, %v293
    %v295 = vsel %vm294, -inf, %v275
    %vm296 = vcmp.eq.f32.partialorder %v295, -inf
    %v297 = vsel %vm296, %v171, 0.0
    %298 = vst [vmem:[#allocation2] sm:$0xff] %v297
    // Predicated region
    $region14: #{tpu_custom_call.1} parent=1 // pred_check
      _
    $region15: #{tpu_custom_call.1} parent=1 // pred_check_branch
      %300 = sbr.rel (0) target = $region17
    $region16: #{tpu_custom_call.1} parent=1 // pred_region
      %s302 = ssub.s32 128, 128
      %303 = vsyncadd [#allocation3], %s302
      %s305 = sshll.u32 [#allocation2], 4
      %s306 = int_to_ptr.vmem [resolvable:$true] %s305
      %308 = dma.vmem_to_hbm [thread:$0]  %s306, 128, %s3, [#allocation3]
    $region17: #{tpu_custom_call.1} parent=1 // pred_fallthru
      _
    // Predicated region
    $region18: #{tpu_custom_call.1} parent=1 // pred_check
      _
    $region19: #{tpu_custom_call.1} parent=1 // pred_check_branch
      %310 = sbr.rel (0) target = $region21
    $region20: #{tpu_custom_call.1} parent=1 // pred_region
      %311 = dma.done [#allocation3], 128
    $region21: #{tpu_custom_call.1} parent=1 // pred_fallthru
      _
    %312 = vsyncpa [#allocation3], 1

</llo_original>
